<compile_context>
chip_gen: v7x
topology: tpu7x:2x2x1
jax: 0.10.0
libtpu: 0.0.40
codegen_flags: <defaults>
</compile_context>

<pallas_src>
from functools import partial

import jax
import jax.numpy as jnp
import numpy as np
from jax.experimental import pallas as pl
from jax.experimental.pallas import tpu as pltpu


_ARBITRARY = getattr(pltpu, "ARBITRARY", "arbitrary")
_CORE_PARALLEL = getattr(pltpu, "CORE_PARALLEL", getattr(pltpu, "PARALLEL", "parallel"))


def _tpu_info():
    try:
        return pltpu.get_tpu_info()
    except Exception:
        return None


def _vmem_capacity_bytes() -> int:
    info = _tpu_info()
    if info is not None:
        for name in ("vmem_capacity_bytes", "vmem_bytes", "vmem_size_bytes"):
            v = getattr(info, name, None)
            if v:
                return int(v)
    return 64 << 20  # conservative (v7x per-core VMEM)


def _num_tensorcores() -> int:
    info = _tpu_info()
    if info is not None:
        for name in ("num_tensorcores", "tensorcore_count", "num_cores", "cores_per_chip"):
            v = getattr(info, name, None)
            if v:
                return int(v)
    return 1


def _spec(shape, index_map, n_buffers):
    """BlockSpec with pipeline depth; falls back if pipeline_mode unsupported."""
    buffered = getattr(pl, "Buffered", None)
    if buffered is not None:
        try:
            return pl.BlockSpec(shape, index_map, pipeline_mode=buffered(n_buffers))
        except TypeError:
            pass
    return pl.BlockSpec(shape, index_map)


def _pick_feature_tile(P: int, *, N: int, d: int, MN: int, budget_bytes: int) -> int:
    """Largest lane-aligned feature tile whose buffers fit the VMEM budget.

    Prefers the full P when it fits (no pointless tiling of a tiny grid)."""
    if P % 128 != 0:
        return P  # odd feature dim: single full-width block
    fixed = 4 * (MN * d)                    # z scratch
    fixed += 4 * (2 * N * d + MN * d)       # single-buffered mean/log_var/noise blocks

    def cost(pt):
        stream = 4 * 3 * (d + N + 1) * pt   # up-to-3-deep buffered w/target/bias tiles
        return fixed + stream + 4 * pt      # + (1, Pt) accumulator

    candidates = [P] + [t for t in (8192, 4096, 2048, 1024, 512, 256, 128)
                        if t < P and P % t == 0]
    for pt in candidates:
        if cost(pt) <= budget_bytes:
            return pt
    return 128


def elbo_kernel(mean_ref, logvar_ref, noise_ref, w_ref, b_ref, target_ref,
                out_ref, z_ref, acc_ref, prior_ref, *,
                beta: float, M: int, N: int, inv_norm: float):
    """Grid = (core_split, feature_tiles); scratch is per-core."""
    c = pl.program_id(0)          # read at kernel top level (interpret-safe)
    j = pl.program_id(1)
    ntj = pl.num_programs(1)

    # ---- once per core: prior matching + reparameterized latents ----------
    @pl.when(j == 0)
    def _init():
        mu = mean_ref[...].astype(jnp.float32)        # (N, d)
        lv = logvar_ref[...].astype(jnp.float32)      # (N, d)
        prior_ref[0] = 0.5 * jnp.mean(jnp.exp(lv) - 1.0 + mu * mu - lv)
        sigma = jnp.exp(0.5 * lv)                     # (N, d)
        eps = noise_ref[...].astype(jnp.float32)      # (M*N, d), m-major rows
        if M == 1:
            z_ref[...] = mu + sigma * eps
        else:
            dlat = mu.shape[-1]
            z3 = mu[None] + sigma[None] * eps.reshape(M, N, dlat)   # (M, N, d)
            z_ref[...] = z3.reshape(M * N, dlat)
        acc_ref[...] = jnp.zeros_like(acc_ref)

    # ---- per feature tile: one batched decoder matmul + squared error -----
    w = w_ref[...].astype(jnp.float32)                # (d, Pt)
    b = b_ref[...].astype(jnp.float32)                # (1, Pt)
    t_adj = target_ref[...].astype(jnp.float32) - b   # (N, Pt), bias folded once

    y = jnp.dot(z_ref[...], w, preferred_element_type=jnp.float32)   # (M*N, Pt)
    if M == 1:
        dd = y - t_adj
        sq_n = dd * dd                                # (N, Pt)
    else:
        dd = y.reshape(M, N, -1) - t_adj[None]        # broadcast target over M (no copy)
        sq_n = jnp.sum(dd * dd, axis=0)               # (N, Pt), M reduced on XLU
    acc_ref[...] += jnp.sum(sq_n, axis=0, keepdims=True)   # (1, Pt) accumulator

    # ---- once per core: final reduce + emit this core's partial loss ------
    @pl.when(j == ntj - 1)
    def _finalize():
        recon = jnp.sum(acc_ref[...]) * jnp.float32(inv_norm)
        prior_term = jnp.where(c == 0,
                               jnp.float32(beta) * prior_ref[0],
                               jnp.float32(0.0))
        out_ref[0, 0] = recon + prior_term


def elbo_loss(mean, log_var, noise, w_dec, b_dec, x_input, *, beta: float = 1.0):
    """mean/log_var: (N, d); noise: (M, N, d); w_dec: (d, C*H*W);
    b_dec: (C*H*W,); x_input: (N, C, H, W). Returns the scalar ELBO loss."""
    M, N, d = noise.shape
    Nx, C, H, W = x_input.shape
    assert Nx == N and mean.shape == (N, d) and log_var.shape == (N, d)
    P = C * H * W
    MN = M * N

    target = x_input.reshape(N, P)          # NCHW row-major flatten (matches torch)
    b2 = b_dec.reshape(1, P)
    noise2 = noise.reshape(MN, d)           # m-major rows, matches torch .view(-1, d)

    n_cores = _num_tensorcores()
    vmem_cap = _vmem_capacity_bytes()
    tile_budget = max(8 << 20, vmem_cap // 2 - (8 << 20))

    Pt = _pick_feature_tile(P, N=N, d=d, MN=MN, budget_bytes=tile_budget)
    num_tiles = P // Pt

    # Real 2-way TensorCore split only when the chip has >1 TC.
    n_split = n_cores if n_cores > 1 else 1
    if n_split > 1:
        if num_tiles == 1 and P % (128 * n_split) == 0:
            Pt = P // n_split
            num_tiles = n_split
        if num_tiles < n_split or num_tiles % n_split != 0:
            n_split = 1
    ntj = num_tiles // n_split
    n_buf = 3 if ntj > 2 else 2             # deeper pipelining only when it can help

    kernel = partial(elbo_kernel, beta=float(beta), M=int(M), N=int(N),
                     inv_norm=0.5 / float(M * N * P))

    def tile_map(c, j):                      # feature-tile block index
        return (0, c * ntj + j)

    grid_spec = pltpu.PrefetchScalarGridSpec(
        num_scalar_prefetch=0,
        grid=(n_split, ntj),
        in_specs=[
            _spec((N, d), lambda c, j: (0, 0), 1),    # mean (grid-invariant)
            _spec((N, d), lambda c, j: (0, 0), 1),    # log_var (grid-invariant)
            _spec((MN, d), lambda c, j: (0, 0), 1),   # MC noise (grid-invariant)
            _spec((d, Pt), tile_map, n_buf),          # decoder weight tile (streamed)
            _spec((1, Pt), tile_map, n_buf),          # decoder bias tile (streamed)
            _spec((N, Pt), tile_map, n_buf),          # flattened target tile (streamed)
        ],
        out_specs=pl.BlockSpec((1, 1), lambda c, j: (c, 0),
                               memory_space=pltpu.MemorySpace.SMEM),
        scratch_shapes=[
            pltpu.VMEM((MN, d), jnp.float32),     # z (latents), computed once per core
            pltpu.VMEM((1, Pt), jnp.float32),     # sublane-reduced sq-error accumulator
            pltpu.SMEM((1,), jnp.float32),        # prior scalar
        ],
    )

    needed = 4 * (n_buf * (d + N + 1) * Pt + Pt + 2 * MN * d + 2 * N * d)
    vmem_limit = int(min(max(needed + (4 << 20), 32 << 20),
                         max(32 << 20, vmem_cap - (2 << 20))))

    dim_sem = (_CORE_PARALLEL, _ARBITRARY) if n_split > 1 else (_ARBITRARY, _ARBITRARY)

    partials = pl.pallas_call(
        kernel,
        out_shape=jax.ShapeDtypeStruct((n_split, 1), jnp.float32),
        grid_spec=grid_spec,
        compiler_params=pltpu.CompilerParams(
            dimension_semantics=dim_sem,
            vmem_limit_bytes=vmem_limit),
        cost_estimate=pl.CostEstimate(
            flops=2 * MN * d * P + 4 * MN * P,
            transcendentals=2 * N * d,
            bytes_accessed=4 * (N * P + d * P + P + 2 * N * d + MN * d + n_split)),
    )(mean, log_var, noise2, w_dec, b2, target)

    return jnp.sum(partials)


def elbo_loss_ref(mean, log_var, noise, w_dec, b_dec, x_input, *, beta=1.0):
    """Pure-JAX reference mirroring the PyTorch module (noise passed in)."""
    M, N, d = noise.shape
    _, C, H, W = x_input.shape
    prior = 0.5 * jnp.mean(jnp.exp(log_var) - 1.0 + mean ** 2 - log_var)
    z = mean[None] + jnp.exp(log_var / 2.0)[None] * noise          # (M, N, d)
    z = z.reshape(-1, d)
    out = z @ w_dec + b_dec                                        # (M*N, C*H*W)
    tgt = jnp.broadcast_to(x_input[None], (M, N, C, H, W)).reshape(M * N, -1)
    recon = 0.5 * jnp.mean((out - tgt) ** 2)
    return beta * prior + recon


if __name__ == "__main__":
    # Small, deterministic shapes consistent with the module's forward.
    N, C, H, W = 2, 4, 16, 16          # X_input: (N, C, H, W)
    d = 8                              # latent dimension
    M = 2                              # Monte-Carlo samples
    beta = 1.0
    P = C * H * W

    key = jax.random.PRNGKey(0)
    k_mu, k_lv, k_x, k_eps, k_w, k_b = jax.random.split(key, 6)

    mean = 0.5 * jax.random.normal(k_mu, (N, d), dtype=jnp.float32)
    log_var = 0.1 * jax.random.normal(k_lv, (N, d), dtype=jnp.float32)
    x_input = jax.random.uniform(k_x, (N, C, H, W), dtype=jnp.float32)

    # torch.randn_like is stochastic; the MC noise is drawn deterministically
    # in the wrapper and passed to the kernel.
    noise = jax.random.normal(k_eps, (M, N, d), dtype=jnp.float32)

    # Deterministic "decoder" parameters: dense d -> C*H*W.
    w_dec = 0.02 * jax.random.normal(k_w, (d, P), dtype=jnp.float32)
    b_dec = 0.01 * jax.random.normal(k_b, (P,), dtype=jnp.float32)

    loss = elbo_loss(mean, log_var, noise, w_dec, b_dec, x_input, beta=beta)
    loss = jax.block_until_ready(loss)

    ref = elbo_loss_ref(mean, log_var, noise, w_dec, b_dec, x_input, beta=beta)
    np.testing.assert_allclose(np.asarray(loss), np.asarray(ref), rtol=1e-5, atol=1e-5)

    print("KERNEL_OK")
</pallas_src>

<mosaic_0001>
module attributes {stable_mosaic.version = 11 : i64} {
  func.func @elbo_kernel(%arg0: i32, %arg1: i32, %arg2: memref<2x8xf32, #tpu.memory_space<vmem>>, %arg3: memref<2x8xf32, #tpu.memory_space<vmem>>, %arg4: memref<4x8xf32, #tpu.memory_space<vmem>>, %arg5: memref<8x1024xf32, #tpu.memory_space<vmem>>, %arg6: memref<1x1024xf32, #tpu.memory_space<vmem>>, %arg7: memref<2x1024xf32, #tpu.memory_space<vmem>>, %arg8: memref<1x1xf32, #tpu.memory_space<smem>>, %arg9: memref<4x8xf32, #tpu.memory_space<vmem>>, %arg10: memref<1x1024xf32, #tpu.memory_space<vmem>>, %arg11: memref<1xf32, #tpu.memory_space<smem>>) attributes {dimension_semantics = [#tpu.dimension_semantics<arbitrary>, #tpu.dimension_semantics<arbitrary>], iteration_bounds = array<i64: 1, 1>, scalar_prefetch = 0 : i64, scratch_operands = 3 : i64, tpu.core_type = #tpu.core_type<tc>, window_params = [{pipeline_mode = #tpu.pipeline_mode<synchronous>, transform_indices = @transform_0, window_bounds = array<i64: 2, 8>}, {pipeline_mode = #tpu.pipeline_mode<synchronous>, transform_indices = @transform_1, window_bounds = array<i64: 2, 8>}, {pipeline_mode = #tpu.pipeline_mode<synchronous>, transform_indices = @transform_2, window_bounds = array<i64: 4, 8>}, {pipeline_mode = #tpu.pipeline_mode<double_buffered>, transform_indices = @transform_3, window_bounds = array<i64: 8, 1024>}, {pipeline_mode = #tpu.pipeline_mode<double_buffered>, transform_indices = @transform_4, window_bounds = array<i64: 1, 1024>}, {pipeline_mode = #tpu.pipeline_mode<double_buffered>, transform_indices = @transform_5, window_bounds = array<i64: 2, 1024>}, {transform_indices = @transform_6, window_bounds = array<i64: 1, 1>}]} {
    %c0_i32 = arith.constant 0 : i32
    %0 = arith.cmpi eq, %arg1, %c0_i32 : i32
    %1 = arith.extui %0 : i1 to i32
    %c0_i32_0 = arith.constant 0 : i32
    %2 = arith.cmpi ne, %1, %c0_i32_0 : i32
    scf.if %2 {
      %c0_16 = arith.constant 0 : index
      %c0_17 = arith.constant 0 : index
      %24 = vector.load %arg2[%c0_16, %c0_17] : memref<2x8xf32, #tpu.memory_space<vmem>>, vector<2x8xf32>
      %c0_18 = arith.constant 0 : index
      %c0_19 = arith.constant 0 : index
      %25 = vector.load %arg3[%c0_18, %c0_19] : memref<2x8xf32, #tpu.memory_space<vmem>>, vector<2x8xf32>
      %26 = math.exp %25 : vector<2x8xf32>
      %cst_20 = arith.constant 1.000000e+00 : f32
      %27 = vector.broadcast %cst_20 : f32 to vector<2x8xf32>
      %28 = arith.subf %26, %27 : vector<2x8xf32>
      %29 = arith.mulf %24, %24 : vector<2x8xf32>
      %30 = arith.addf %28, %29 : vector<2x8xf32>
      %31 = arith.subf %30, %25 : vector<2x8xf32>
      %32 = vector.shape_cast %31 : vector<2x8xf32> to vector<1x2x8xf32>
      %cst_21 = arith.constant dense<0.000000e+00> : vector<1xf32>
      %33 = vector.multi_reduction <add>, %32, %cst_21 [1, 2] : vector<1x2x8xf32> to vector<1xf32>
      %34 = vector.shape_cast %33 : vector<1xf32> to vector<1x1x1xf32>
      %35 = vector.extract %34[0, 0, 0] : f32 from vector<1x1x1xf32>
      %cst_22 = arith.constant 1.600000e+01 : f32
      %36 = arith.divf %35, %cst_22 : f32
      %cst_23 = arith.constant 5.000000e-01 : f32
      %37 = arith.mulf %cst_23, %36 : f32
      %c0_24 = arith.constant 0 : index
      %38 = memref.load %arg11[%c0_24] : memref<1xf32, #tpu.memory_space<smem>>
      memref.store %37, %arg11[%c0_24] : memref<1xf32, #tpu.memory_space<smem>>
      %cst_25 = arith.constant 5.000000e-01 : f32
      %39 = vector.broadcast %cst_25 : f32 to vector<2x8xf32>
      %40 = arith.mulf %39, %25 : vector<2x8xf32>
      %41 = math.exp %40 : vector<2x8xf32>
      %c0_26 = arith.constant 0 : index
      %c0_27 = arith.constant 0 : index
      %42 = vector.load %arg4[%c0_26, %c0_27] : memref<4x8xf32, #tpu.memory_space<vmem>>, vector<4x8xf32>
      %43 = vector.shape_cast %24 : vector<2x8xf32> to vector<1x2x8xf32>
      %44 = vector.shape_cast %41 : vector<2x8xf32> to vector<1x2x8xf32>
      %45 = vector.shape_cast %42 : vector<4x8xf32> to vector<2x2x8xf32>
      %46 = vector.broadcast %44 : vector<1x2x8xf32> to vector<2x2x8xf32>
      %47 = arith.mulf %46, %45 : vector<2x2x8xf32>
      %48 = vector.broadcast %43 : vector<1x2x8xf32> to vector<2x2x8xf32>
      %49 = arith.addf %48, %47 : vector<2x2x8xf32>
      %50 = vector.shape_cast %49 : vector<2x2x8xf32> to vector<4x8xf32>
      %c0_28 = arith.constant 0 : index
      %c0_29 = arith.constant 0 : index
      %51 = vector.load %arg9[%c0_28, %c0_29] : memref<4x8xf32, #tpu.memory_space<vmem>>, vector<4x8xf32>
      tpu.vector_store %arg9[%c0_28, %c0_29], %50 {strides = array<i32>} : memref<4x8xf32, #tpu.memory_space<vmem>>, vector<4x8xf32>,
      %cst_30 = arith.constant 0.000000e+00 : f32
      %52 = vector.broadcast %cst_30 : f32 to vector<1x1024xf32>
      %c0_31 = arith.constant 0 : index
      %c0_32 = arith.constant 0 : index
      %53 = vector.load %arg10[%c0_31, %c0_32] : memref<1x1024xf32, #tpu.memory_space<vmem>>, vector<1x1024xf32>
      tpu.vector_store %arg10[%c0_31, %c0_32], %52 {strides = array<i32>} : memref<1x1024xf32, #tpu.memory_space<vmem>>, vector<1x1024xf32>,
    } else {
    }
    %c0 = arith.constant 0 : index
    %c0_1 = arith.constant 0 : index
    %3 = vector.load %arg5[%c0, %c0_1] : memref<8x1024xf32, #tpu.memory_space<vmem>>, vector<8x1024xf32>
    %c0_2 = arith.constant 0 : index
    %c0_3 = arith.constant 0 : index
    %4 = vector.load %arg6[%c0_2, %c0_3] : memref<1x1024xf32, #tpu.memory_space<vmem>>, vector<1x1024xf32>
    %c0_4 = arith.constant 0 : index
    %c0_5 = arith.constant 0 : index
    %5 = vector.load %arg7[%c0_4, %c0_5] : memref<2x1024xf32, #tpu.memory_space<vmem>>, vector<2x1024xf32>
    %6 = vector.broadcast %4 : vector<1x1024xf32> to vector<2x1024xf32>
    %7 = arith.subf %5, %6 : vector<2x1024xf32>
    %c0_6 = arith.constant 0 : index
    %c0_7 = arith.constant 0 : index
    %8 = vector.load %arg9[%c0_6, %c0_7] : memref<4x8xf32, #tpu.memory_space<vmem>>, vector<4x8xf32>
    %cst = arith.constant dense<0.000000e+00> : vector<4x1024xf32>
    %9 = tpu.matmul %8, %3, %cst {dimension_numbers = #tpu.dot_dimension_numbers<[1], [0], [0], [1], [0, 0, 1, 1], [], []>} : vector<4x8xf32>, vector<8x1024xf32>, vector<4x1024xf32> -> vector<4x1024xf32>
    %10 = vector.shape_cast %9 : vector<4x1024xf32> to vector<2x2x1024xf32>
    %11 = vector.shape_cast %7 : vector<2x1024xf32> to vector<1x2x1024xf32>
    %12 = vector.broadcast %11 : vector<1x2x1024xf32> to vector<2x2x1024xf32>
    %13 = arith.subf %10, %12 : vector<2x2x1024xf32>
    %14 = arith.mulf %13, %13 : vector<2x2x1024xf32>
    %cst_8 = arith.constant dense<0.000000e+00> : vector<2x1024xf32>
    %15 = vector.multi_reduction <add>, %14, %cst_8 [0] : vector<2x2x1024xf32> to vector<2x1024xf32>
    %c0_9 = arith.constant 0 : index
    %c0_10 = arith.constant 0 : index
    %16 = vector.load %arg10[%c0_9, %c0_10] : memref<1x1024xf32, #tpu.memory_space<vmem>>, vector<1x1024xf32>
    %cst_11 = arith.constant dense<0.000000e+00> : vector<1024xf32>
    %17 = vector.multi_reduction <add>, %15, %cst_11 [0] : vector<2x1024xf32> to vector<1024xf32>
    %18 = vector.shape_cast %17 : vector<1024xf32> to vector<1x1024xf32>
    %19 = arith.addf %16, %18 : vector<1x1024xf32>
    %c0_12 = arith.constant 0 : index
    %c0_13 = arith.constant 0 : index
    %20 = vector.load %arg10[%c0_12, %c0_13] : memref<1x1024xf32, #tpu.memory_space<vmem>>, vector<1x1024xf32>
    tpu.vector_store %arg10[%c0_12, %c0_13], %19 {strides = array<i32>} : memref<1x1024xf32, #tpu.memory_space<vmem>>, vector<1x1024xf32>,
    %c0_i32_14 = arith.constant 0 : i32
    %21 = arith.cmpi eq, %arg1, %c0_i32_14 : i32
    %22 = arith.extui %21 : i1 to i32
    %c0_i32_15 = arith.constant 0 : i32
    %23 = arith.cmpi ne, %22, %c0_i32_15 : i32
    scf.if %23 {
      %c0_16 = arith.constant 0 : index
      %c0_17 = arith.constant 0 : index
      %24 = vector.load %arg10[%c0_16, %c0_17] : memref<1x1024xf32, #tpu.memory_space<vmem>>, vector<1x1024xf32>
      %25 = vector.shape_cast %24 : vector<1x1024xf32> to vector<1x1x1024xf32>
      %cst_18 = arith.constant dense<0.000000e+00> : vector<1xf32>
      %26 = vector.multi_reduction <add>, %25, %cst_18 [1, 2] : vector<1x1x1024xf32> to vector<1xf32>
      %27 = vector.shape_cast %26 : vector<1xf32> to vector<1x1x1xf32>
      %28 = vector.extract %27[0, 0, 0] : f32 from vector<1x1x1xf32>
      %cst_19 = arith.constant 1.22070313E-4 : f32
      %29 = arith.mulf %28, %cst_19 : f32
      %c0_i32_20 = arith.constant 0 : i32
      %30 = arith.cmpi eq, %arg0, %c0_i32_20 : i32
      %c0_21 = arith.constant 0 : index
      %31 = memref.load %arg11[%c0_21] : memref<1xf32, #tpu.memory_space<smem>>
      %cst_22 = arith.constant 1.000000e+00 : f32
      %32 = arith.mulf %cst_22, %31 : f32
      %cst_23 = arith.constant 0.000000e+00 : f32
      %33 = arith.select %30, %32, %cst_23 : f32
      %34 = arith.addf %29, %33 : f32
      %c0_24 = arith.constant 0 : index
      %c0_25 = arith.constant 0 : index
      %35 = memref.load %arg8[%c0_24, %c0_25] : memref<1x1xf32, #tpu.memory_space<smem>>
      memref.store %34, %arg8[%c0_24, %c0_25] : memref<1x1xf32, #tpu.memory_space<smem>>
    } else {
    }
    return
  }
  func.func @transform_0(%arg0: i32, %arg1: i32) -> (i32, i32) {
    %c0_i32 = arith.constant 0 : i32
    %c0_i32_0 = arith.constant 0 : i32
    %c0_i32_1 = arith.constant 0 : i32
    return %c0_i32, %c0_i32_0 : i32, i32
  }
  func.func @transform_1(%arg0: i32, %arg1: i32) -> (i32, i32) {
    %c0_i32 = arith.constant 0 : i32
    %c0_i32_0 = arith.constant 0 : i32
    %c0_i32_1 = arith.constant 0 : i32
    return %c0_i32, %c0_i32_0 : i32, i32
  }
  func.func @transform_2(%arg0: i32, %arg1: i32) -> (i32, i32) {
    %c0_i32 = arith.constant 0 : i32
    %c0_i32_0 = arith.constant 0 : i32
    %c0_i32_1 = arith.constant 0 : i32
    return %c0_i32, %c0_i32_0 : i32, i32
  }
  func.func @transform_3(%arg0: i32, %arg1: i32) -> (i32, i32) {
    %c1_i32 = arith.constant 1 : i32
    %0 = arith.muli %arg0, %c1_i32 : i32
    %1 = arith.addi %0, %arg1 : i32
    %c0_i32 = arith.constant 0 : i32
    %c0_i32_0 = arith.constant 0 : i32
    return %c0_i32, %1 : i32, i32
  }
  func.func @transform_4(%arg0: i32, %arg1: i32) -> (i32, i32) {
    %c1_i32 = arith.constant 1 : i32
    %0 = arith.muli %arg0, %c1_i32 : i32
    %1 = arith.addi %0, %arg1 : i32
    %c0_i32 = arith.constant 0 : i32
    %c0_i32_0 = arith.constant 0 : i32
    return %c0_i32, %1 : i32, i32
  }
  func.func @transform_5(%arg0: i32, %arg1: i32) -> (i32, i32) {
    %c1_i32 = arith.constant 1 : i32
    %0 = arith.muli %arg0, %c1_i32 : i32
    %1 = arith.addi %0, %arg1 : i32
    %c0_i32 = arith.constant 0 : i32
    %c0_i32_0 = arith.constant 0 : i32
    return %c0_i32, %1 : i32, i32
  }
  func.func @transform_6(%arg0: i32, %arg1: i32) -> (i32, i32) {
    %c0_i32 = arith.constant 0 : i32
    %c0_i32_0 = arith.constant 0 : i32
    return %arg0, %c0_i32 : i32, i32
  }
}

</mosaic_0001>

<llo_original>
// kernel: tpu_custom_call.1
$region0: #{tpu_custom_call.1}
  #allocation0 [shape = 'u32[]', space=smem, size = 0x4, offset = 0x4, fixed_abs, tag = 'smem constant byte address 0x4 - core index']
  #allocation1 [shape = 'u32[144,128]{1,0:T(1,128)}', space=vmem, size = 0x12000, scoped, tag = 'internal scratch']
  #allocation2 [shape = 'f32[4,8]{1,0:T(4,128)}', space=vmem, size = 0x800, scoped, tag = 'scratch operand']
  #allocation3 [shape = 'f32[1,1024]{1,0:T(1,128)}', space=vmem, size = 0x1000, scoped, tag = 'scratch operand']
  #allocation4 [shape = 'f32[1]{0:T(128)}', space=smem, size = 0x200, scoped, tag = 'scratch operand']
  %s0 = inlined_call_operand.hbm [shape: f32[2,8], index: 0, kind: input, shape index: {}]
  %s1 = inlined_call_operand.vmem [shape: f32[2,8], index: 1, kind: input, shape index: {}]
  %s2 = inlined_call_operand.hbm [shape: f32[4,8], index: 2, kind: input, shape index: {}]
  %s3 = inlined_call_operand.hbm [shape: f32[8,1024], index: 3, kind: input, shape index: {}]
  %s4 = inlined_call_operand.hbm [shape: f32[1,1024], index: 4, kind: input, shape index: {}]
  %s5 = inlined_call_operand.vmem [shape: f32[2,1024], index: 5, kind: input, shape index: {}]
  %s6 = inlined_call_operand.hbm [shape: f32[1,1], index: 6, kind: output, shape index: {}]
  %s7 = sld [smem:[#allocation0]]
  $region58: #{tpu_custom_call.1} parent=0
    _
  %s9 = ssub.s32 1, %s7
  %s10 = scalar_select 0, %s9, %s7
  $region1: #{tpu_custom_call.1} parent=0
    #allocation5 [shape = 'u8[1024]{0}', space=vmem, size = 0x400, scoped, tag = 'input window, operand 0, single buffered']
    #allocation6 [shape = 's32[1]{0}', space=sflag, size = 0x4, scoped, tag = 'scoped memory for tpu_custom_call.1']
    #allocation7 [shape = 's32[1]{0}', space=sflag, size = 0x4, scoped, tag = 'scoped memory for tpu_custom_call.1']
    #allocation8 [shape = 'u8[2048]{0}', space=vmem, size = 0x800, scoped, tag = 'input window, operand 2, single buffered']
    #allocation9 [shape = 's32[1]{0}', space=sflag, size = 0x4, scoped, tag = 'scoped memory for tpu_custom_call.1']
    #allocation10 [shape = 'u8[32768]{0}', space=vmem, size = 0x8000, scoped, tag = 'input window, operand 3, single buffered']
    #allocation11 [shape = 'u8[4096]{0}', space=vmem, size = 0x1000, scoped, tag = 'input window, operand 4, single buffered']
    #allocation12 [shape = 's32[1]{0}', space=sflag, size = 0x4, scoped, tag = 'scoped memory for tpu_custom_call.1']
    #allocation13 [shape = 'u8[512]{0}', space=smem, size = 0x200, scoped, tag = 'output window, operand 0, single buffered']
    %11 = vsyncpa [#allocation6], 0
    %12 = vsyncpa [#allocation9], 0
    %13 = vsyncpa [#allocation12], 0
    %14 = vsyncpa [#allocation7], 0
    // Predicated region
    $region2: #{tpu_custom_call.1} parent=1 // pred_check
      _
    $region3: #{tpu_custom_call.1} parent=1 // pred_check_branch
      %16 = sbr.rel (0) target = $region5
    $region4: #{tpu_custom_call.1} parent=1 // pred_region
      %s18 = ssub.s32 32, 32
      %19 = vsyncadd [#allocation6], %s18
      %s21 = sshll.u32 [#allocation5], 4
      %s22 = int_to_ptr.vmem [resolvable:$true] %s21
      %24 = dma.hbm_to_vmem [thread:$0]  %s0, 32, %s22, [#allocation6]
    $region5: #{tpu_custom_call.1} parent=1 // pred_fallthru
      _
    // Predicated region
    $region6: #{tpu_custom_call.1} parent=1 // pred_check
      _
    $region7: #{tpu_custom_call.1} parent=1 // pred_check_branch
      %26 = sbr.rel (0) target = $region9
    $region8: #{tpu_custom_call.1} parent=1 // pred_region
      _
    $region9: #{tpu_custom_call.1} parent=1 // pred_fallthru
      _
    // Predicated region
    $region10: #{tpu_custom_call.1} parent=1 // pred_check
      _
    $region11: #{tpu_custom_call.1} parent=1 // pred_check_branch
      %28 = sbr.rel (0) target = $region13
    $region12: #{tpu_custom_call.1} parent=1 // pred_region
      %s30 = ssub.s32 64, 64
      %31 = vsyncadd [#allocation9], %s30
      %s33 = sshll.u32 [#allocation8], 4
      %s34 = int_to_ptr.vmem [resolvable:$true] %s33
      %36 = dma.hbm_to_vmem [thread:$0]  %s2, 64, %s34, [#allocation9]
    $region13: #{tpu_custom_call.1} parent=1 // pred_fallthru
      _
    // Predicated region
    $region14: #{tpu_custom_call.1} parent=1 // pred_check
      _
    $region15: #{tpu_custom_call.1} parent=1 // pred_check_branch
      %38 = sbr.rel (0) target = $region17
    $region16: #{tpu_custom_call.1} parent=1 // pred_region
      %s39 = sadd.s32 0, 0
      %s40 = smul.u32 8, %s39
      %s42 = ssub.s32 1024, 1024
      %43 = vsyncadd [#allocation9], %s42
      %s44 = smul.addr %s40, 128
      %s45 = scalar_lea.hbm %s3, %s44
      %s47 = sshll.u32 [#allocation10], 4
      %s48 = int_to_ptr.vmem [resolvable:$true] %s47
      %50 = dma.hbm_to_vmem [thread:$0]  %s45, 1024, %s48, [#allocation9]
    $region17: #{tpu_custom_call.1} parent=1 // pred_fallthru
      _
    // Predicated region
    $region18: #{tpu_custom_call.1} parent=1 // pred_check
      _
    $region19: #{tpu_custom_call.1} parent=1 // pred_check_branch
      %52 = sbr.rel (0) target = $region21
    $region20: #{tpu_custom_call.1} parent=1 // pred_region
      %s53 = sadd.s32 0, 0
      %s54 = smul.u32 8, %s53
      %s56 = ssub.s32 128, 128
      %57 = vsyncadd [#allocation12], %s56
      %s58 = smul.addr %s54, 16
      %s59 = scalar_lea.hbm %s4, %s58
      %s61 = sshll.u32 [#allocation11], 4
      %s62 = int_to_ptr.vmem [resolvable:$true] %s61
      %64 = dma.hbm_to_vmem [thread:$0]  %s59, 128, %s62, [#allocation12]
    $region21: #{tpu_custom_call.1} parent=1 // pred_fallthru
      _
    // Predicated region
    $region22: #{tpu_custom_call.1} parent=1 // pred_check
      _
    $region23: #{tpu_custom_call.1} parent=1 // pred_check_branch
      %66 = sbr.rel (0) target = $region25
    $region24: #{tpu_custom_call.1} parent=1 // pred_region
      %s67 = sadd.s32 0, 0
      %s68 = smul.u32 8, %s67
      %p69 = scmp.lt.s32.totalorder %s68, 7
      %s70 = scalar_select %p69, %s68, 7
      %s71 = smul.addr %s70, 2
      %s72 = scalar_lea.vmem %s5, %s71
      %s73 = sadd.s32 0, 0
      %s74 = smul.u32 8, %s73
    $region25: #{tpu_custom_call.1} parent=1 // pred_fallthru
      _
    // Predicated region
    $region26: #{tpu_custom_call.1} parent=1 // pred_check
      _
    $region27: #{tpu_custom_call.1} parent=1 // pred_check_branch
      %76 = sbr.rel (0) target = $region29
    $region28: #{tpu_custom_call.1} parent=1 // pred_region
      %77 = dma.done [#allocation6], 32
    $region29: #{tpu_custom_call.1} parent=1 // pred_fallthru
      _
    // Predicated region
    $region30: #{tpu_custom_call.1} parent=1 // pred_check
      _
    $region31: #{tpu_custom_call.1} parent=1 // pred_check_branch
      %79 = sbr.rel (0) target = $region33
    $region32: #{tpu_custom_call.1} parent=1 // pred_region
      %80 = dma.done [#allocation9], 64
    $region33: #{tpu_custom_call.1} parent=1 // pred_fallthru
      _
    // Predicated region
    $region34: #{tpu_custom_call.1} parent=1 // pred_check
      _
    $region35: #{tpu_custom_call.1} parent=1 // pred_check_branch
      %82 = sbr.rel (0) target = $region37
    $region36: #{tpu_custom_call.1} parent=1 // pred_region
      %83 = dma.done [#allocation9], 1024
    $region37: #{tpu_custom_call.1} parent=1 // pred_fallthru
      _
    // Predicated region
    $region38: #{tpu_custom_call.1} parent=1 // pred_check
      _
    $region39: #{tpu_custom_call.1} parent=1 // pred_check_branch
      %85 = sbr.rel (0) target = $region41
    $region40: #{tpu_custom_call.1} parent=1 // pred_region
      %86 = dma.done [#allocation12], 128
    $region41: #{tpu_custom_call.1} parent=1 // pred_fallthru
      _
    %s87 = sadd.s32 0, 0
    %s88 = smul.u32 8, %s87
    %p89 = scmp.lt.s32.totalorder %s88, 7
    %s90 = scalar_select %p89, %s88, 7
    %s91 = smul.addr %s90, 2
    %s92 = scalar_lea.vmem %s5, %s91
    %s93 = sadd.s32 0, 0
    %s94 = smul.u32 8, %s93
    %s95 = sadd.s32 0, 0
    %s96 = smul.u32 8, %s95
    %s97 = sadd.s32 0, 0
    %s98 = smul.u32 8, %s97
    %p99 = scmp.lt.s32.totalorder %s98, 7
    %s100 = scalar_select %p99, %s98, 7
    %s101 = smul.addr %s100, 2
    %s102 = scalar_lea.vmem %s5, %s101
    %s103 = sadd.s32 0, 0
    %s104 = smul.u32 8, %s103
    %p105 = scmp.eq.s32.totalorder 0, 0
    // Predicated region
    $region42: #{tpu_custom_call.1} parent=1 // pred_check
      %p106 = pneg %p105
    $region43: #{tpu_custom_call.1} parent=1 // pred_check_branch
      %108 = sbr.rel (%p106) target = $region45
    $region44: #{tpu_custom_call.1} parent=1 // pred_region
      %v109 = vld [vmem:[#allocation5] sm:$0x3]
      %v110 = vld [vmem:[%s1] sm:$0x3]
      %v111 = vmul.f32 %v110, 1.442695
      %v112 = vpow.pop %v111
      %v113 = vsub.f32 %v112, 1.0
      %v114 = vmul.f32 %v109, %v109
      %v115 = vadd.f32 %v113, %v114
      %v116 = vsub.f32 %v115, %v110
      %vm117 = vcmask 58368
      %v118 = vsel %vm117, %v116, 0.0
      %119 = vadd.xlane.f32.xlu0 %v118
      %v120 = vpop.xlane.xlu0 %119
      %v121 = vrot.slane %v120, 4
      %v122 = vadd.f32 %v120, %v121
      %v123 = vrot.slane %v122, 2
      %v124 = vadd.f32 %v122, %v123
      %v125 = vrot.slane %v124, 1
      %v126 = vadd.f32 %v124, %v125
      %s127 = vtos %v126
      %v128 = vrcp.pop 16.0
      %s129 = vtos %v128
      %s130 = smul.f32 %s127, %s129
      %s131 = smul.f32 %s130, 0.5
      %s132 = scalar_lea.smem [#allocation4], 0
      %133 = sst [smem:[%s132]] %s131
      %v134 = vmul.f32 %v110, 0.5
      %v135 = vmul.f32 %v134, 1.442695
      %v136 = vpow.pop %v135
      %v137 = vld [vmem:[#allocation8] sm:$0xf]
      %v140 = vunpack.c.l.s4 1983009808
      %v141 = vunpack.c.0.s8 %v140
      %v142 = vlaneseq
      %v143 = vshrl.u32 %v142, 7
      %v144 = vsub.s32 %v141, %v143
      %v145 = vrot.slane %v137, %v144
      %v146 = vcombine.high %v145, %v145
      %v149 = vmul.f32 %v136, %v145
      %v150 = vmul.f32 %v136, %v146
      %v151 = vadd.f32 %v109, %v149
      %v152 = vadd.f32 %v109, %v150
      %v155 = vcombine.low %v151, %v152
      %v157 = vunpack.c.l.s4 1983009808
      %v158 = vunpack.c.0.s8 %v157
      %v159 = vlaneseq
      %v160 = vshrl.u32 %v159, 7
      %v161 = vsub.s32 %v158, %v160
      %v162 = vrot.slane %v155, %v161
      %vm164 = vcmask 60416
      %165 = vst.msk [vmem:[#allocation2] sm:$0xf] %vm164, %v162
      %166 = vst [vmem:[#allocation3] sm:$0xff] 0.0
    $region45: #{tpu_custom_call.1} parent=1 // pred_fallthru
      _
    %v167 = vld [vmem:[#allocation10] sm:$0xff]
    %v168 = vld [vmem:[#allocation10 + $0x8] sm:$0xff]
    %v169 = vld [vmem:[#allocation10 + $0x10] sm:$0xff]
    %v170 = vld [vmem:[#allocation10 + $0x18] sm:$0xff]
    %v171 = vld [vmem:[#allocation10 + $0x20] sm:$0xff]
    %v172 = vld [vmem:[#allocation10 + $0x28] sm:$0xff]
    %v173 = vld [vmem:[#allocation10 + $0x30] sm:$0xff]
    %v174 = vld [vmem:[#allocation10 + $0x38] sm:$0xff]
    %v175 = vld [vmem:[#allocation11] sm:$0xff]
    %v176 = vld [vmem:[%s102] sm:$0xff]
    %v177 = vld [vmem:[%s102 + $0x8] sm:$0xff]
    %v179 = vlaneseq
    %v180 = vshrl.u32 %v179, 7
    %v181 = vsub.s32 0, %v180
    %v182 = vrot.slane %v175, %v181
    %v183 = vlaneseq
    %v184 = vshrl.u32 %v183, 7
    %v185 = vsub.s32 1, %v184
    %v186 = vrot.slane %v175, %v185
    %v187 = vlaneseq
    %v188 = vshrl.u32 %v187, 7
    %v189 = vsub.s32 2, %v188
    %v190 = vrot.slane %v175, %v189
    %v191 = vlaneseq
    %v192 = vshrl.u32 %v191, 7
    %v193 = vsub.s32 3, %v192
    %v194 = vrot.slane %v175, %v193
    %v195 = vlaneseq
    %v196 = vshrl.u32 %v195, 7
    %v197 = vsub.s32 4, %v196
    %v198 = vrot.slane %v175, %v197
    %v199 = vlaneseq
    %v200 = vshrl.u32 %v199, 7
    %v201 = vsub.s32 5, %v200
    %v202 = vrot.slane %v175, %v201
    %v203 = vlaneseq
    %v204 = vshrl.u32 %v203, 7
    %v205 = vsub.s32 6, %v204
    %v206 = vrot.slane %v175, %v205
    %v207 = vlaneseq
    %v208 = vshrl.u32 %v207, 7
    %v209 = vsub.s32 7, %v208
    %v210 = vrot.slane %v175, %v209
    %v211 = vcombine.low %v182, %v186
    %v212 = vcombine.low %v190, %v194
    %v214 = vunpack.c.l.s4 1983009808
    %v215 = vunpack.c.0.s8 %v214
    %v216 = vlaneseq
    %v217 = vshrl.u32 %v216, 7
    %v218 = vsub.s32 %v215, %v217
    %v219 = vrot.slane %v211, %v218
    %v221 = vunpack.c.l.s4 1983009808
    %v222 = vunpack.c.0.s8 %v221
    %v223 = vlaneseq
    %v224 = vshrl.u32 %v223, 7
    %v225 = vsub.s32 %v222, %v224
    %v226 = vrot.slane %v212, %v225
    %v227 = vcombine.low %v219, %v226
    %v228 = vcombine.low %v198, %v202
    %v229 = vcombine.low %v206, %v210
    %v231 = vunpack.c.l.s4 1983009808
    %v232 = vunpack.c.0.s8 %v231
    %v233 = vlaneseq
    %v234 = vshrl.u32 %v233, 7
    %v235 = vsub.s32 %v232, %v234
    %v236 = vrot.slane %v228, %v235
    %v238 = vunpack.c.l.s4 1983009808
    %v239 = vunpack.c.0.s8 %v238
    %v240 = vlaneseq
    %v241 = vshrl.u32 %v240, 7
    %v242 = vsub.s32 %v239, %v241
    %v243 = vrot.slane %v229, %v242
    %v244 = vcombine.low %v236, %v243
    %v247 = vsub.f32 %v176, %v227
    %v248 = vsub.f32 %v177, %v244
    %v249 = vld [vmem:[#allocation2] sm:$0xf]
    %vm250 = vcmask 64512
    %v252 = vsel %vm250, %v249, 0
    %254 = vmatprep.subr.mxu0 %v168
    %255 = vmatpush1.msra.mxu0 %v167
    %256 = vmatprep.subr.mxu0 0.0
    %257 = vmatpush1.msra.mxu0 0.0
    %258 = vmatprep.subr.mxu0 0.0
    %259 = vmatpush1.msra.mxu0 0.0
    %260 = vmatprep.subr.mxu0 0.0
    %261 = vmatpush1.msra.mxu0 0.0
    %262 = vmatprep.subr.mxu0 0.0
    %263 = vmatpush1.msra.mxu0 0.0
    %264 = vmatprep.subr.mxu0 0.0
    %265 = vmatpush1.msra.mxu0 0.0
    %266 = vmatprep.subr.mxu0 0.0
    %267 = vmatpush1.msra.mxu0 0.0
    %268 = vmatprep.subr.mxu0 0.0
    %269 = vmatpush1.msra.mxu0 0.0
    %270 = vmatprep.subr.mxu0 0.0
    %271 = vmatpush1.msra.mxu0 0.0
    %272 = vmatprep.subr.mxu0 0.0
    %273 = vmatpush1.msra.mxu0 0.0
    %274 = vmatprep.subr.mxu0 0.0
    %275 = vmatpush1.msra.mxu0 0.0
    %276 = vmatprep.subr.mxu0 0.0
    %277 = vmatpush1.msra.mxu0 0.0
    %278 = vmatprep.subr.mxu0 0.0
    %279 = vmatpush1.msra.mxu0 0.0
    %280 = vmatprep.subr.mxu0 0.0
    %281 = vmatpush1.msra.mxu0 0.0
    %282 = vmatprep.subr.mxu0 0.0
    %283 = vmatpush1.msra.mxu0 0.0
    %284 = vmatprep.subr.mxu0 0.0
    %285 = vmatpush1.msra.mxu0 0.0
    %286 = vmatprep.subr.mxu0 0.0
    %287 = vmatpush1.msra.mxu0 0.0
    %288 = vmatprep.subr.mxu0 0.0
    %289 = vmatpush1.msra.mxu0 0.0
    %290 = vmatprep.subr.mxu0 0.0
    %291 = vmatpush1.msra.mxu0 0.0
    %292 = vmatprep.subr.mxu0 0.0
    %293 = vmatpush1.msra.mxu0 0.0
    %294 = vmatprep.subr.mxu0 0.0
    %295 = vmatpush1.msra.mxu0 0.0
    %296 = vmatprep.subr.mxu0 0.0
    %297 = vmatpush1.msra.mxu0 0.0
    %298 = vmatprep.subr.mxu0 0.0
    %299 = vmatpush1.msra.mxu0 0.0
    %300 = vmatprep.subr.mxu0 0.0
    %301 = vmatpush1.msra.mxu0 0.0
    %302 = vmatprep.subr.mxu0 0.0
    %303 = vmatpush1.msra.mxu0 0.0
    %304 = vmatprep.subr.mxu0 0.0
    %305 = vmatpush1.msra.mxu0 0.0
    %306 = vmatprep.subr.mxu0 0.0
    %307 = vmatpush1.msra.mxu0 0.0
    %308 = vmatprep.subr.mxu0 0.0
    %309 = vmatpush1.msra.mxu0 0.0
    %310 = vmatprep.subr.mxu0 0.0
    %311 = vmatpush1.msra.mxu0 0.0
    %312 = vmatprep.subr.mxu0 0.0
    %313 = vmatpush1.msra.mxu0 0.0
    %314 = vmatprep.subr.mxu0 0.0
    %315 = vmatpush1.msra.mxu0 0.0
    %316 = vmatprep.subr.mxu0 0.0
    %317 = vmatpush1.msra.mxu0 0.0
    %318 = vmatprep.mubr.f32.mxu0 0.0
    %319 = vmatmul.mubr.f32.gmra.mrb[0].mxu0 %v252
    %v320 = vpop.f32.mrb[0].mxu0
    %v321 = vadd.f32 0.0, %v320
    %v322 = vpop.f32.mrb[0].mxu0
    %v323 = vadd.f32 0.0, %v322
    %324 = vdwg.mxu0
    %325 = vmatprep.subr.mxu0 %v170
    %326 = vmatpush1.msra.mxu0 %v169
    %327 = vmatprep.subr.mxu0 0.0
    %328 = vmatpush1.msra.mxu0 0.0
    %329 = vmatprep.subr.mxu0 0.0
    %330 = vmatpush1.msra.mxu0 0.0
    %331 = vmatprep.subr.mxu0 0.0
    %332 = vmatpush1.msra.mxu0 0.0
    %333 = vmatprep.subr.mxu0 0.0
    %334 = vmatpush1.msra.mxu0 0.0
    %335 = vmatprep.subr.mxu0 0.0
    %336 = vmatpush1.msra.mxu0 0.0
    %337 = vmatprep.subr.mxu0 0.0
    %338 = vmatpush1.msra.mxu0 0.0
    %339 = vmatprep.subr.mxu0 0.0
    %340 = vmatpush1.msra.mxu0 0.0
    %341 = vmatprep.subr.mxu0 0.0
    %342 = vmatpush1.msra.mxu0 0.0
    %343 = vmatprep.subr.mxu0 0.0
    %344 = vmatpush1.msra.mxu0 0.0
    %345 = vmatprep.subr.mxu0 0.0
    %346 = vmatpush1.msra.mxu0 0.0
    %347 = vmatprep.subr.mxu0 0.0
    %348 = vmatpush1.msra.mxu0 0.0
    %349 = vmatprep.subr.mxu0 0.0
    %350 = vmatpush1.msra.mxu0 0.0
    %351 = vmatprep.subr.mxu0 0.0
    %352 = vmatpush1.msra.mxu0 0.0
    %353 = vmatprep.subr.mxu0 0.0
    %354 = vmatpush1.msra.mxu0 0.0
    %355 = vmatprep.subr.mxu0 0.0
    %356 = vmatpush1.msra.mxu0 0.0
    %357 = vmatprep.subr.mxu0 0.0
    %358 = vmatpush1.msra.mxu0 0.0
    %359 = vmatprep.subr.mxu0 0.0
    %360 = vmatpush1.msra.mxu0 0.0
    %361 = vmatprep.subr.mxu0 0.0
    %362 = vmatpush1.msra.mxu0 0.0
    %363 = vmatprep.subr.mxu0 0.0
    %364 = vmatpush1.msra.mxu0 0.0
    %365 = vmatprep.subr.mxu0 0.0
    %366 = vmatpush1.msra.mxu0 0.0
    %367 = vmatprep.subr.mxu0 0.0
    %368 = vmatpush1.msra.mxu0 0.0
    %369 = vmatprep.subr.mxu0 0.0
    %370 = vmatpush1.msra.mxu0 0.0
    %371 = vmatprep.subr.mxu0 0.0
    %372 = vmatpush1.msra.mxu0 0.0
    %373 = vmatprep.subr.mxu0 0.0
    %374 = vmatpush1.msra.mxu0 0.0
    %375 = vmatprep.subr.mxu0 0.0
    %376 = vmatpush1.msra.mxu0 0.0
    %377 = vmatprep.subr.mxu0 0.0
    %378 = vmatpush1.msra.mxu0 0.0
    %379 = vmatprep.subr.mxu0 0.0
    %380 = vmatpush1.msra.mxu0 0.0
    %381 = vmatprep.subr.mxu0 0.0
    %382 = vmatpush1.msra.mxu0 0.0
    %383 = vmatprep.subr.mxu0 0.0
    %384 = vmatpush1.msra.mxu0 0.0
    %385 = vmatprep.subr.mxu0 0.0
    %386 = vmatpush1.msra.mxu0 0.0
    %387 = vmatprep.subr.mxu0 0.0
    %388 = vmatpush1.msra.mxu0 0.0
    %389 = vmatprep.mubr.f32.mxu0 0.0
    %390 = vmatmul.mubr.f32.gmra.mrb[0].mxu0 %v252
    %v391 = vpop.f32.mrb[0].mxu0
    %v392 = vadd.f32 0.0, %v391
    %v393 = vpop.f32.mrb[0].mxu0
    %v394 = vadd.f32 0.0, %v393
    %395 = vdwg.mxu0
    %396 = vmatprep.subr.mxu0 %v172
    %397 = vmatpush1.msra.mxu0 %v171
    %398 = vmatprep.subr.mxu0 0.0
    %399 = vmatpush1.msra.mxu0 0.0
    %400 = vmatprep.subr.mxu0 0.0
    %401 = vmatpush1.msra.mxu0 0.0
    %402 = vmatprep.subr.mxu0 0.0
    %403 = vmatpush1.msra.mxu0 0.0
    %404 = vmatprep.subr.mxu0 0.0
    %405 = vmatpush1.msra.mxu0 0.0
    %406 = vmatprep.subr.mxu0 0.0
    %407 = vmatpush1.msra.mxu0 0.0
    %408 = vmatprep.subr.mxu0 0.0
    %409 = vmatpush1.msra.mxu0 0.0
    %410 = vmatprep.subr.mxu0 0.0
    %411 = vmatpush1.msra.mxu0 0.0
    %412 = vmatprep.subr.mxu0 0.0
    %413 = vmatpush1.msra.mxu0 0.0
    %414 = vmatprep.subr.mxu0 0.0
    %415 = vmatpush1.msra.mxu0 0.0
    %416 = vmatprep.subr.mxu0 0.0
    %417 = vmatpush1.msra.mxu0 0.0
    %418 = vmatprep.subr.mxu0 0.0
    %419 = vmatpush1.msra.mxu0 0.0
    %420 = vmatprep.subr.mxu0 0.0
    %421 = vmatpush1.msra.mxu0 0.0
    %422 = vmatprep.subr.mxu0 0.0
    %423 = vmatpush1.msra.mxu0 0.0
    %424 = vmatprep.subr.mxu0 0.0
    %425 = vmatpush1.msra.mxu0 0.0
    %426 = vmatprep.subr.mxu0 0.0
    %427 = vmatpush1.msra.mxu0 0.0
    %428 = vmatprep.subr.mxu0 0.0
    %429 = vmatpush1.msra.mxu0 0.0
    %430 = vmatprep.subr.mxu0 0.0
    %431 = vmatpush1.msra.mxu0 0.0
    %432 = vmatprep.subr.mxu0 0.0
    %433 = vmatpush1.msra.mxu0 0.0
    %434 = vmatprep.subr.mxu0 0.0
    %435 = vmatpush1.msra.mxu0 0.0
    %436 = vmatprep.subr.mxu0 0.0
    %437 = vmatpush1.msra.mxu0 0.0
    %438 = vmatprep.subr.mxu0 0.0
    %439 = vmatpush1.msra.mxu0 0.0
    %440 = vmatprep.subr.mxu0 0.0
    %441 = vmatpush1.msra.mxu0 0.0
    %442 = vmatprep.subr.mxu0 0.0
    %443 = vmatpush1.msra.mxu0 0.0
    %444 = vmatprep.subr.mxu0 0.0
    %445 = vmatpush1.msra.mxu0 0.0
    %446 = vmatprep.subr.mxu0 0.0
    %447 = vmatpush1.msra.mxu0 0.0
    %448 = vmatprep.subr.mxu0 0.0
    %449 = vmatpush1.msra.mxu0 0.0
    %450 = vmatprep.subr.mxu0 0.0
    %451 = vmatpush1.msra.mxu0 0.0
    %452 = vmatprep.subr.mxu0 0.0
    %453 = vmatpush1.msra.mxu0 0.0
    %454 = vmatprep.subr.mxu0 0.0
    %455 = vmatpush1.msra.mxu0 0.0
    %456 = vmatprep.subr.mxu0 0.0
    %457 = vmatpush1.msra.mxu0 0.0
    %458 = vmatprep.subr.mxu0 0.0
    %459 = vmatpush1.msra.mxu0 0.0
    %460 = vmatprep.mubr.f32.mxu0 0.0
    %461 = vmatmul.mubr.f32.gmra.mrb[0].mxu0 %v252
    %v462 = vpop.f32.mrb[0].mxu0
    %v463 = vadd.f32 0.0, %v462
    %v464 = vpop.f32.mrb[0].mxu0
    %v465 = vadd.f32 0.0, %v464
    %466 = vdwg.mxu0
    %467 = vmatprep.subr.mxu0 %v174
    %468 = vmatpush1.msra.mxu0 %v173
    %469 = vmatprep.subr.mxu0 0.0
    %470 = vmatpush1.msra.mxu0 0.0
    %471 = vmatprep.subr.mxu0 0.0
    %472 = vmatpush1.msra.mxu0 0.0
    %473 = vmatprep.subr.mxu0 0.0
    %474 = vmatpush1.msra.mxu0 0.0
    %475 = vmatprep.subr.mxu0 0.0
    %476 = vmatpush1.msra.mxu0 0.0
    %477 = vmatprep.subr.mxu0 0.0
    %478 = vmatpush1.msra.mxu0 0.0
    %479 = vmatprep.subr.mxu0 0.0
    %480 = vmatpush1.msra.mxu0 0.0
    %481 = vmatprep.subr.mxu0 0.0
    %482 = vmatpush1.msra.mxu0 0.0
    %483 = vmatprep.subr.mxu0 0.0
    %484 = vmatpush1.msra.mxu0 0.0
    %485 = vmatprep.subr.mxu0 0.0
    %486 = vmatpush1.msra.mxu0 0.0
    %487 = vmatprep.subr.mxu0 0.0
    %488 = vmatpush1.msra.mxu0 0.0
    %489 = vmatprep.subr.mxu0 0.0
    %490 = vmatpush1.msra.mxu0 0.0
    %491 = vmatprep.subr.mxu0 0.0
    %492 = vmatpush1.msra.mxu0 0.0
    %493 = vmatprep.subr.mxu0 0.0
    %494 = vmatpush1.msra.mxu0 0.0
    %495 = vmatprep.subr.mxu0 0.0
    %496 = vmatpush1.msra.mxu0 0.0
    %497 = vmatprep.subr.mxu0 0.0
    %498 = vmatpush1.msra.mxu0 0.0
    %499 = vmatprep.subr.mxu0 0.0
    %500 = vmatpush1.msra.mxu0 0.0
    %501 = vmatprep.subr.mxu0 0.0
    %502 = vmatpush1.msra.mxu0 0.0
    %503 = vmatprep.subr.mxu0 0.0
    %504 = vmatpush1.msra.mxu0 0.0
    %505 = vmatprep.subr.mxu0 0.0
    %506 = vmatpush1.msra.mxu0 0.0
    %507 = vmatprep.subr.mxu0 0.0
    %508 = vmatpush1.msra.mxu0 0.0
    %509 = vmatprep.subr.mxu0 0.0
    %510 = vmatpush1.msra.mxu0 0.0
    %511 = vmatprep.subr.mxu0 0.0
    %512 = vmatpush1.msra.mxu0 0.0
    %513 = vmatprep.subr.mxu0 0.0
    %514 = vmatpush1.msra.mxu0 0.0
    %515 = vmatprep.subr.mxu0 0.0
    %516 = vmatpush1.msra.mxu0 0.0
    %517 = vmatprep.subr.mxu0 0.0
    %518 = vmatpush1.msra.mxu0 0.0
    %519 = vmatprep.subr.mxu0 0.0
    %520 = vmatpush1.msra.mxu0 0.0
    %521 = vmatprep.subr.mxu0 0.0
    %522 = vmatpush1.msra.mxu0 0.0
    %523 = vmatprep.subr.mxu0 0.0
    %524 = vmatpush1.msra.mxu0 0.0
    %525 = vmatprep.subr.mxu0 0.0
    %526 = vmatpush1.msra.mxu0 0.0
    %527 = vmatprep.subr.mxu0 0.0
    %528 = vmatpush1.msra.mxu0 0.0
    %529 = vmatprep.subr.mxu0 0.0
    %530 = vmatpush1.msra.mxu0 0.0
    %531 = vmatprep.mubr.f32.mxu0 0.0
    %532 = vmatmul.mubr.f32.gmra.mrb[0].mxu0 %v252
    %v533 = vpop.f32.mrb[0].mxu0
    %v534 = vadd.f32 0.0, %v533
    %v535 = vpop.f32.mrb[0].mxu0
    %v536 = vadd.f32 0.0, %v535
    %537 = vdwg.mxu0
    %v546 = vcombine.low %v321, %v323
    %v547 = vcombine.low %v392, %v394
    %v549 = vunpack.c.l.s4 1983009808
    %v550 = vunpack.c.0.s8 %v549
    %v551 = vlaneseq
    %v552 = vshrl.u32 %v551, 7
    %v553 = vsub.s32 %v550, %v552
    %v554 = vrot.slane %v546, %v553
    %v556 = vunpack.c.l.s4 1983009808
    %v557 = vunpack.c.0.s8 %v556
    %v558 = vlaneseq
    %v559 = vshrl.u32 %v558, 7
    %v560 = vsub.s32 %v557, %v559
    %v561 = vrot.slane %v547, %v560
    %v562 = vcombine.low %v554, %v561
    %v563 = vcombine.high %v554, %v561
    %v564 = vcombine.low %v463, %v465
    %v565 = vcombine.low %v534, %v536
    %v567 = vunpack.c.l.s4 1983009808
    %v568 = vunpack.c.0.s8 %v567
    %v569 = vlaneseq
    %v570 = vshrl.u32 %v569, 7
    %v571 = vsub.s32 %v568, %v570
    %v572 = vrot.slane %v564, %v571
    %v574 = vunpack.c.l.s4 1983009808
    %v575 = vunpack.c.0.s8 %v574
    %v576 = vlaneseq
    %v577 = vshrl.u32 %v576, 7
    %v578 = vsub.s32 %v575, %v577
    %v579 = vrot.slane %v565, %v578
    %v580 = vcombine.low %v572, %v579
    %v581 = vcombine.high %v572, %v579
    %v586 = vsub.f32 %v562, %v247
    %v587 = vsub.f32 %v580, %v248
    %v588 = vsub.f32 %v563, %v247
    %v589 = vsub.f32 %v581, %v248
    %v590 = vmul.f32 %v586, %v586
    %v591 = vmul.f32 %v587, %v587
    %v592 = vmul.f32 %v588, %v588
    %v593 = vmul.f32 %v589, %v589
    %v598 = vcombine.high %v590, %v590
    %v600 = vunpack.c.l.s4 1983009808
    %v601 = vunpack.c.0.s8 %v600
    %v602 = vlaneseq
    %v603 = vshrl.u32 %v602, 7
    %v604 = vsub.s32 %v601, %v603
    %v605 = vrot.slane %v590, %v604
    %v607 = vunpack.c.l.s4 1983009808
    %v608 = vunpack.c.0.s8 %v607
    %v609 = vlaneseq
    %v610 = vshrl.u32 %v609, 7
    %v611 = vsub.s32 %v608, %v610
    %v612 = vrot.slane %v598, %v611
    %v613 = vcombine.high %v605, %v605
    %v614 = vcombine.high %v612, %v612
    %v615 = vcombine.high %v591, %v591
    %v617 = vunpack.c.l.s4 1983009808
    %v618 = vunpack.c.0.s8 %v617
    %v619 = vlaneseq
    %v620 = vshrl.u32 %v619, 7
    %v621 = vsub.s32 %v618, %v620
    %v622 = vrot.slane %v591, %v621
    %v624 = vunpack.c.l.s4 1983009808
    %v625 = vunpack.c.0.s8 %v624
    %v626 = vlaneseq
    %v627 = vshrl.u32 %v626, 7
    %v628 = vsub.s32 %v625, %v627
    %v629 = vrot.slane %v615, %v628
    %v630 = vcombine.high %v622, %v622
    %v631 = vcombine.high %v629, %v629
    %v632 = vcombine.high %v592, %v592
    %v634 = vunpack.c.l.s4 1983009808
    %v635 = vunpack.c.0.s8 %v634
    %v636 = vlaneseq
    %v637 = vshrl.u32 %v636, 7
    %v638 = vsub.s32 %v635, %v637
    %v639 = vrot.slane %v592, %v638
    %v641 = vunpack.c.l.s4 1983009808
    %v642 = vunpack.c.0.s8 %v641
    %v643 = vlaneseq
    %v644 = vshrl.u32 %v643, 7
    %v645 = vsub.s32 %v642, %v644
    %v646 = vrot.slane %v632, %v645
    %v647 = vcombine.high %v639, %v639
    %v648 = vcombine.high %v646, %v646
    %v649 = vcombine.high %v593, %v593
    %v651 = vunpack.c.l.s4 1983009808
    %v652 = vunpack.c.0.s8 %v651
    %v653 = vlaneseq
    %v654 = vshrl.u32 %v653, 7
    %v655 = vsub.s32 %v652, %v654
    %v656 = vrot.slane %v593, %v655
    %v658 = vunpack.c.l.s4 1983009808
    %v659 = vunpack.c.0.s8 %v658
    %v660 = vlaneseq
    %v661 = vshrl.u32 %v660, 7
    %v662 = vsub.s32 %v659, %v661
    %v663 = vrot.slane %v649, %v662
    %v664 = vcombine.high %v656, %v656
    %v665 = vcombine.high %v663, %v663
    %vm682 = vcmask 1041408
    %v683 = vsel %vm682, %v605, 0.0
    %v684 = vsel %vm682, %v639, 0.0
    %v685 = vadd.f32 %v683, %v684
    %v686 = vsel %vm682, %v613, 0.0
    %v687 = vsel %vm682, %v647, 0.0
    %v688 = vadd.f32 %v686, %v687
    %v689 = vsel %vm682, %v612, 0.0
    %v690 = vsel %vm682, %v646, 0.0
    %v691 = vadd.f32 %v689, %v690
    %v692 = vsel %vm682, %v614, 0.0
    %v693 = vsel %vm682, %v648, 0.0
    %v694 = vadd.f32 %v692, %v693
    %v695 = vsel %vm682, %v622, 0.0
    %v696 = vsel %vm682, %v656, 0.0
    %v697 = vadd.f32 %v695, %v696
    %v698 = vsel %vm682, %v630, 0.0
    %v699 = vsel %vm682, %v664, 0.0
    %v700 = vadd.f32 %v698, %v699
    %v701 = vsel %vm682, %v629, 0.0
    %v702 = vsel %vm682, %v663, 0.0
    %v703 = vadd.f32 %v701, %v702
    %v704 = vsel %vm682, %v631, 0.0
    %v705 = vsel %vm682, %v665, 0.0
    %v706 = vadd.f32 %v704, %v705
    %v707 = vld [vmem:[#allocation3] sm:$0xff]
    %v708 = vsel %vm682, %v685, 0.0
    %v709 = vrot.slane %v708, 4
    %v710 = vadd.f32 %v708, %v709
    %v711 = vrot.slane %v710, 2
    %v712 = vadd.f32 %v710, %v711
    %v713 = vrot.slane %v712, 1
    %v714 = vadd.f32 %v712, %v713
    %v715 = vsel %vm682, %v688, 0.0
    %v716 = vrot.slane %v715, 4
    %v717 = vadd.f32 %v715, %v716
    %v718 = vrot.slane %v717, 2
    %v719 = vadd.f32 %v717, %v718
    %v720 = vrot.slane %v719, 1
    %v721 = vadd.f32 %v719, %v720
    %v722 = vsel %vm682, %v691, 0.0
    %v723 = vrot.slane %v722, 4
    %v724 = vadd.f32 %v722, %v723
    %v725 = vrot.slane %v724, 2
    %v726 = vadd.f32 %v724, %v725
    %v727 = vrot.slane %v726, 1
    %v728 = vadd.f32 %v726, %v727
    %v729 = vsel %vm682, %v694, 0.0
    %v730 = vrot.slane %v729, 4
    %v731 = vadd.f32 %v729, %v730
    %v732 = vrot.slane %v731, 2
    %v733 = vadd.f32 %v731, %v732
    %v734 = vrot.slane %v733, 1
    %v735 = vadd.f32 %v733, %v734
    %v736 = vsel %vm682, %v697, 0.0
    %v737 = vrot.slane %v736, 4
    %v738 = vadd.f32 %v736, %v737
    %v739 = vrot.slane %v738, 2
    %v740 = vadd.f32 %v738, %v739
    %v741 = vrot.slane %v740, 1
    %v742 = vadd.f32 %v740, %v741
    %v743 = vsel %vm682, %v700, 0.0
    %v744 = vrot.slane %v743, 4
    %v745 = vadd.f32 %v743, %v744
    %v746 = vrot.slane %v745, 2
    %v747 = vadd.f32 %v745, %v746
    %v748 = vrot.slane %v747, 1
    %v749 = vadd.f32 %v747, %v748
    %v750 = vsel %vm682, %v703, 0.0
    %v751 = vrot.slane %v750, 4
    %v752 = vadd.f32 %v750, %v751
    %v753 = vrot.slane %v752, 2
    %v754 = vadd.f32 %v752, %v753
    %v755 = vrot.slane %v754, 1
    %v756 = vadd.f32 %v754, %v755
    %v757 = vsel %vm682, %v706, 0.0
    %v758 = vrot.slane %v757, 4
    %v759 = vadd.f32 %v757, %v758
    %v760 = vrot.slane %v759, 2
    %v761 = vadd.f32 %v759, %v760
    %v762 = vrot.slane %v761, 1
    %v763 = vadd.f32 %v761, %v762
    %v772 = vcombine.low %v714, %v721
    %v773 = vcombine.low %v728, %v735
    %v774 = vcombine.low %v742, %v749
    %v775 = vcombine.low %v756, %v763
    %v777 = vunpack.c.l.s4 1966171168
    %v778 = vunpack.c.0.s8 %v777
    %v779 = vlaneseq
    %v780 = vshrl.u32 %v779, 7
    %v781 = vsub.s32 %v778, %v780
    %v782 = vrot.slane %v772, %v781
    %v784 = vunpack.c.l.s4 1966171168
    %v785 = vunpack.c.0.s8 %v784
    %v786 = vlaneseq
    %v787 = vshrl.u32 %v786, 7
    %v788 = vsub.s32 %v785, %v787
    %v789 = vrot.slane %v773, %v788
    %v791 = vunpack.c.l.s4 1966171168
    %v792 = vunpack.c.0.s8 %v791
    %v793 = vlaneseq
    %v794 = vshrl.u32 %v793, 7
    %v795 = vsub.s32 %v792, %v794
    %v796 = vrot.slane %v774, %v795
    %v798 = vunpack.c.l.s4 1966171168
    %v799 = vunpack.c.0.s8 %v798
    %v800 = vlaneseq
    %v801 = vshrl.u32 %v800, 7
    %v802 = vsub.s32 %v799, %v801
    %v803 = vrot.slane %v775, %v802
    %v804 = vcombine.low %v782, %v789
    %v805 = vcombine.low %v796, %v803
    %v807 = vunpack.c.l.s4 1966171168
    %v808 = vunpack.c.0.s8 %v807
    %v809 = vlaneseq
    %v810 = vshrl.u32 %v809, 7
    %v811 = vsub.s32 %v808, %v810
    %v812 = vrot.slane %v804, %v811
    %v814 = vunpack.c.l.s4 1966171168
    %v815 = vunpack.c.0.s8 %v814
    %v816 = vlaneseq
    %v817 = vshrl.u32 %v816, 7
    %v818 = vsub.s32 %v815, %v817
    %v819 = vrot.slane %v805, %v818
    %v820 = vcombine.low %v812, %v819
    %v822 = vadd.f32 %v707, %v820
    %823 = vst [vmem:[#allocation3] sm:$0xff] %v822
    // Predicated region
    $region46: #{tpu_custom_call.1} parent=1 // pred_check
      %p824 = pneg %p105
    $region47: #{tpu_custom_call.1} parent=1 // pred_check_branch
      %826 = sbr.rel (%p824) target = $region49
    $region48: #{tpu_custom_call.1} parent=1 // pred_region
      %v827 = vld [vmem:[#allocation3] sm:$0xff]
      %v829 = vlaneseq
      %v830 = vshrl.u32 %v829, 7
      %v831 = vsub.s32 0, %v830
      %v832 = vrot.slane %v827, %v831
      %v833 = vlaneseq
      %v834 = vshrl.u32 %v833, 7
      %v835 = vsub.s32 1, %v834
      %v836 = vrot.slane %v827, %v835
      %v837 = vlaneseq
      %v838 = vshrl.u32 %v837, 7
      %v839 = vsub.s32 2, %v838
      %v840 = vrot.slane %v827, %v839
      %v841 = vlaneseq
      %v842 = vshrl.u32 %v841, 7
      %v843 = vsub.s32 3, %v842
      %v844 = vrot.slane %v827, %v843
      %v845 = vlaneseq
      %v846 = vshrl.u32 %v845, 7
      %v847 = vsub.s32 4, %v846
      %v848 = vrot.slane %v827, %v847
      %v849 = vlaneseq
      %v850 = vshrl.u32 %v849, 7
      %v851 = vsub.s32 5, %v850
      %v852 = vrot.slane %v827, %v851
      %v853 = vlaneseq
      %v854 = vshrl.u32 %v853, 7
      %v855 = vsub.s32 6, %v854
      %v856 = vrot.slane %v827, %v855
      %v857 = vlaneseq
      %v858 = vshrl.u32 %v857, 7
      %v859 = vsub.s32 7, %v858
      %v860 = vrot.slane %v827, %v859
      %vm869 = vcmask 1040384
      %v870 = vsel %vm869, %v832, 0.0
      %v871 = vsel %vm869, %v836, 0.0
      %v872 = vadd.f32 %v870, %v871
      %v873 = vsel %vm869, %v840, 0.0
      %v874 = vadd.f32 %v872, %v873
      %v875 = vsel %vm869, %v844, 0.0
      %v876 = vadd.f32 %v874, %v875
      %v877 = vsel %vm869, %v848, 0.0
      %v878 = vadd.f32 %v876, %v877
      %v879 = vsel %vm869, %v852, 0.0
      %v880 = vadd.f32 %v878, %v879
      %v881 = vsel %vm869, %v856, 0.0
      %v882 = vadd.f32 %v880, %v881
      %v883 = vsel %vm869, %v860, 0.0
      %v884 = vadd.f32 %v882, %v883
      %885 = vadd.xlane.f32.xlu0 %v884
      %v886 = vpop.xlane.xlu0 %885
      %v887 = vrot.slane %v886, 4
      %v888 = vadd.f32 %v886, %v887
      %v889 = vrot.slane %v888, 2
      %v890 = vadd.f32 %v888, %v889
      %v891 = vrot.slane %v890, 1
      %v892 = vadd.f32 %v890, %v891
      %s893 = vtos %v892
      %s894 = smul.f32 %s893, 0.00012207031
      %p895 = scmp.eq.s32.totalorder 0, 0
      %s896 = sld [smem:[#allocation4]]
      %s897 = scalar_select %p895, %s896, 0.0
      %s898 = sadd.f32 %s894, %s897
      %s899 = scalar_lea.smem [#allocation13], 0
      %900 = sst [smem:[%s899]] %s898
    $region49: #{tpu_custom_call.1} parent=1 // pred_fallthru
      _
    // Predicated region
    $region50: #{tpu_custom_call.1} parent=1 // pred_check
      _
    $region51: #{tpu_custom_call.1} parent=1 // pred_check_branch
      %902 = sbr.rel (0) target = $region53
    $region52: #{tpu_custom_call.1} parent=1 // pred_region
      %s904 = ssub.s32 16, 16
      %905 = vsyncadd [#allocation7], %s904
      %908 = dma.smem_to_hbm [#allocation13], 16, %s6, [#allocation7]
    $region53: #{tpu_custom_call.1} parent=1 // pred_fallthru
      _
    // Predicated region
    $region54: #{tpu_custom_call.1} parent=1 // pred_check
      _
    $region55: #{tpu_custom_call.1} parent=1 // pred_check_branch
      %910 = sbr.rel (0) target = $region57
    $region56: #{tpu_custom_call.1} parent=1 // pred_region
      %911 = dma.done [#allocation7], 16
    $region57: #{tpu_custom_call.1} parent=1 // pred_fallthru
      _
    %912 = sfence
    %913 = vsyncpa [#allocation6], 1
    %914 = vsyncpa [#allocation9], 1
    %915 = vsyncpa [#allocation12], 1
    %916 = vsyncpa [#allocation7], 1

</llo_original>
